<compile_context>
chip_gen: v7x
topology: tpu7x:2x2x1
jax: 0.10.0
libtpu: 0.0.40
codegen_flags: <defaults>
</compile_context>

<pallas_src>
import functools

import jax
import jax.numpy as jnp
from jax.experimental import pallas as pl
from jax.experimental.pallas import tpu as pltpu

_LANE = 128
_BF16_SUBLANE = 16  # bf16 packs 16 rows per vreg sublane tile


def _round_up(n, m):
    return (n + m - 1) // m * m


def _decoder_t_kernel(xu_ref, w1_ref, b1_ref, w2_ref, b2_ref,
                      w3_ref, b3_ref, out_ref, *, k):
    # One batch tile: (TB, d_x+d_u) bf16 -> (TB, k) f32 logits.
    xu = xu_ref[...]                                           # bf16 (pre-cast)

    h1 = jnp.dot(xu, w1_ref[...], preferred_element_type=jnp.float32)
    h1 = jnp.maximum(h1 + b1_ref[...], 0.0)                    # f32 bias + ReLU

    h2 = jnp.dot(h1.astype(jnp.bfloat16), w2_ref[...],
                 preferred_element_type=jnp.float32)
    h2 = jnp.maximum(h2 + b2_ref[...], 0.0)                    # f32 bias + ReLU

    logits = jnp.dot(h2.astype(jnp.bfloat16), w3_ref[...],
                     preferred_element_type=jnp.float32) + b3_ref[...]
    # W3/b3 are lane-padded (k_pad=128) only inside VMEM for MXU lowering;
    # store just the k real logit lanes (narrow masked store, DMA stays small).
    out_ref[...] = logits[:, :k].astype(out_ref.dtype)


def prepare_decoder_t_params(params, d_x, d_u, k):
    """One-time conversion of PyTorch-layout f32 params to kernel layout:
    weights cast to bf16 (biases stay f32 for the f32 epilogue); W3/b3 are
    zero-padded to 128 lanes for the in-kernel MXU only."""
    w1, b1, w2, b2, w3, b3 = params
    k_pad = _round_up(max(k, 1), _LANE)
    w3p = jnp.zeros((w3.shape[0], k_pad), jnp.bfloat16).at[:, :k].set(
        w3.astype(jnp.bfloat16))
    b3p = jnp.zeros((1, k_pad), jnp.float32).at[:, :k].set(b3.astype(jnp.float32))
    return (w1.astype(jnp.bfloat16), b1.astype(jnp.float32),
            w2.astype(jnp.bfloat16), b2.astype(jnp.float32),
            w3p, b3p, k)


def decoder_t_forward(x, u, kernel_params, *, batch_tile=1024):
    """p(t|x,u) logits. x: [B, d_x], u: [B, d_u] -> [B, k] (f32)."""
    w1, b1, w2, b2, w3p, b3p, k = kernel_params
    B = x.shape[0]
    d_in = w1.shape[0]
    h1 = w1.shape[1]
    h2 = w2.shape[1]
    k_pad = w3p.shape[1]

    # Merge the first-layer operands once in the wrapper (24 cols -> cheap) and
    # pre-cast to bf16: halves input HBM read, removes one matmul + one DMA stream.
    xu = jnp.concatenate([x, u], axis=-1).astype(jnp.bfloat16)

    # Batch tile: large (default 1024) for big B; for small B aim for ~2 grid
    # steps so v7x's two TensorCores both get work.  Multiple of 16 (bf16 sublane).
    tb_cap = max(_BF16_SUBLANE, _round_up(pl.cdiv(B, 2), _BF16_SUBLANE))
    tb = _round_up(min(batch_tile, tb_cap), _BF16_SUBLANE)
    grid_b = pl.cdiv(B, tb)
    # Ragged last tile is handled by Pallas partial-block semantics (no jnp.pad).

    weights = (w1, b1, w2, b2, w3p, b3p)
    flops = 2 * B * (d_in * h1 + h1 * h2 + h2 * k_pad)
    bytes_accessed = (xu.size * xu.dtype.itemsize
                      + B * k * 4
                      + sum(a.size * a.dtype.itemsize for a in weights))

    # NOTE: weight/bias blocks have constant index_maps -> VMEM-resident across
    # grid steps (~100 KB incl. default double buffering; not worth pl.Buffered(1)).
    out = pl.pallas_call(
        functools.partial(_decoder_t_kernel, k=k),
        out_shape=jax.ShapeDtypeStruct((B, k), jnp.float32),
        grid_spec=pltpu.PrefetchScalarGridSpec(
            num_scalar_prefetch=0,
            grid=(grid_b,),
            in_specs=[
                pl.BlockSpec((tb, d_in), lambda i: (i, 0)),     # [x|u] tile (bf16)
                pl.BlockSpec((d_in, h1), lambda i: (0, 0)),     # W1 (bf16)
                pl.BlockSpec((1, h1), lambda i: (0, 0)),        # b1 (f32)
                pl.BlockSpec((h1, h2), lambda i: (0, 0)),       # W2 (bf16)
                pl.BlockSpec((1, h2), lambda i: (0, 0)),        # b2 (f32)
                pl.BlockSpec((h2, k_pad), lambda i: (0, 0)),    # W3 (lane-padded)
                pl.BlockSpec((1, k_pad), lambda i: (0, 0)),     # b3 (lane-padded)
            ],
            out_specs=pl.BlockSpec((tb, k), lambda i: (i, 0)),  # narrow (B, k) out
        ),
        compiler_params=pltpu.CompilerParams(
            dimension_semantics=("parallel",)),
        cost_estimate=pl.CostEstimate(
            flops=flops, transcendentals=0, bytes_accessed=bytes_accessed),
    )(xu, w1, b1, w2, b2, w3p, b3p)

    return out


def init_decoder_t_params(key, d_x, d_u, k, hidden_dims=(128, 128)):
    """Deterministic synthetic init (PyTorch Linear-style uniform fan-in bound)."""
    dims = [d_x + d_u, *hidden_dims, k]
    params = []
    for i in range(len(dims) - 1):
        fan_in, fan_out = dims[i], dims[i + 1]
        key, kw, kb = jax.random.split(key, 3)
        bound = 1.0 / jnp.sqrt(fan_in)
        w = jax.random.uniform(kw, (fan_in, fan_out), jnp.float32, -bound, bound)
        b = jax.random.uniform(kb, (1, fan_out), jnp.float32, -bound, bound)
        params += [w, b]
    return tuple(params)


def _reference_forward(x, u, params):
    w1, b1, w2, b2, w3, b3 = params
    h = jnp.concatenate([x, u], axis=-1)
    h = jnp.maximum(h @ w1 + b1, 0.0)
    h = jnp.maximum(h @ w2 + b2, 0.0)
    return h @ w3 + b3


if __name__ == "__main__":
    # Small shapes consistent with DecoderT: p(t | x, u) with K treatment classes.
    B, d_x, d_u, K = 16, 20, 4, 3
    key = jax.random.PRNGKey(0)
    kx, ku, kp = jax.random.split(key, 3)

    x = jax.random.normal(kx, (B, d_x), jnp.float32)
    u = jax.random.normal(ku, (B, d_u), jnp.float32)
    params = init_decoder_t_params(kp, d_x, d_u, K, hidden_dims=(128, 128))
    kernel_params = prepare_decoder_t_params(params, d_x, d_u, K)

    logits = decoder_t_forward(x, u, kernel_params)
    logits = jax.block_until_ready(logits)

    ref = _reference_forward(x, u, params)
    assert logits.shape == (B, K)
    # bf16 MXU operands with f32 accumulation -> tolerance set for bf16 rounding.
    err = float(jnp.max(jnp.abs(logits - ref)))
    assert jnp.allclose(logits, ref, atol=3e-2, rtol=3e-2), err

    print("KERNEL_OK")
</pallas_src>

<mosaic_0001>
module attributes {stable_mosaic.version = 11 : i64} {
  func.func @_decoder_t_kernel(%arg0: i32, %arg1: memref<16x24xbf16, #tpu.memory_space<vmem>>, %arg2: memref<24x128xbf16, #tpu.memory_space<vmem>>, %arg3: memref<1x128xf32, #tpu.memory_space<vmem>>, %arg4: memref<128x128xbf16, #tpu.memory_space<vmem>>, %arg5: memref<1x128xf32, #tpu.memory_space<vmem>>, %arg6: memref<128x128xbf16, #tpu.memory_space<vmem>>, %arg7: memref<1x128xf32, #tpu.memory_space<vmem>>, %arg8: memref<16x3xf32, #tpu.memory_space<vmem>>) attributes {dimension_semantics = [#tpu.dimension_semantics<parallel>], iteration_bounds = array<i64: 1>, scalar_prefetch = 0 : i64, scratch_operands = 0 : i64, tpu.core_type = #tpu.core_type<tc>, window_params = [{transform_indices = @transform_0, window_bounds = array<i64: 16, 24>}, {pipeline_mode = #tpu.pipeline_mode<synchronous>, transform_indices = @transform_1, window_bounds = array<i64: 24, 128>}, {pipeline_mode = #tpu.pipeline_mode<synchronous>, transform_indices = @transform_2, window_bounds = array<i64: 1, 128>}, {pipeline_mode = #tpu.pipeline_mode<synchronous>, transform_indices = @transform_3, window_bounds = array<i64: 128, 128>}, {pipeline_mode = #tpu.pipeline_mode<synchronous>, transform_indices = @transform_4, window_bounds = array<i64: 1, 128>}, {pipeline_mode = #tpu.pipeline_mode<synchronous>, transform_indices = @transform_5, window_bounds = array<i64: 128, 128>}, {pipeline_mode = #tpu.pipeline_mode<synchronous>, transform_indices = @transform_6, window_bounds = array<i64: 1, 128>}, {transform_indices = @transform_7, window_bounds = array<i64: 16, 3>}]} {
    %c0 = arith.constant 0 : index
    %c0_0 = arith.constant 0 : index
    %0 = vector.load %arg1[%c0, %c0_0] : memref<16x24xbf16, #tpu.memory_space<vmem>>, vector<16x24xbf16>
    %c0_1 = arith.constant 0 : index
    %c0_2 = arith.constant 0 : index
    %1 = vector.load %arg2[%c0_1, %c0_2] : memref<24x128xbf16, #tpu.memory_space<vmem>>, vector<24x128xbf16>
    %cst = arith.constant dense<0.000000e+00> : vector<16x128xf32>
    %2 = tpu.matmul %0, %1, %cst {dimension_numbers = #tpu.dot_dimension_numbers<[1], [0], [0], [1], [0, 0, 1, 1], [], []>} : vector<16x24xbf16>, vector<24x128xbf16>, vector<16x128xf32> -> vector<16x128xf32>
    %c0_3 = arith.constant 0 : index
    %c0_4 = arith.constant 0 : index
    %3 = vector.load %arg3[%c0_3, %c0_4] : memref<1x128xf32, #tpu.memory_space<vmem>>, vector<1x128xf32>
    %4 = vector.broadcast %3 : vector<1x128xf32> to vector<16x128xf32>
    %5 = arith.addf %2, %4 : vector<16x128xf32>
    %cst_5 = arith.constant 0.000000e+00 : f32
    %6 = vector.broadcast %cst_5 : f32 to vector<16x128xf32>
    %7 = arith.maximumf %5, %6 : vector<16x128xf32>
    %8 = arith.truncf %7 : vector<16x128xf32> to vector<16x128xbf16>
    %c0_6 = arith.constant 0 : index
    %c0_7 = arith.constant 0 : index
    %9 = vector.load %arg4[%c0_6, %c0_7] : memref<128x128xbf16, #tpu.memory_space<vmem>>, vector<128x128xbf16>
    %cst_8 = arith.constant dense<0.000000e+00> : vector<16x128xf32>
    %10 = tpu.matmul %8, %9, %cst_8 {dimension_numbers = #tpu.dot_dimension_numbers<[1], [0], [0], [1], [0, 0, 1, 1], [], []>} : vector<16x128xbf16>, vector<128x128xbf16>, vector<16x128xf32> -> vector<16x128xf32>
    %c0_9 = arith.constant 0 : index
    %c0_10 = arith.constant 0 : index
    %11 = vector.load %arg5[%c0_9, %c0_10] : memref<1x128xf32, #tpu.memory_space<vmem>>, vector<1x128xf32>
    %12 = vector.broadcast %11 : vector<1x128xf32> to vector<16x128xf32>
    %13 = arith.addf %10, %12 : vector<16x128xf32>
    %cst_11 = arith.constant 0.000000e+00 : f32
    %14 = vector.broadcast %cst_11 : f32 to vector<16x128xf32>
    %15 = arith.maximumf %13, %14 : vector<16x128xf32>
    %16 = arith.truncf %15 : vector<16x128xf32> to vector<16x128xbf16>
    %c0_12 = arith.constant 0 : index
    %c0_13 = arith.constant 0 : index
    %17 = vector.load %arg6[%c0_12, %c0_13] : memref<128x128xbf16, #tpu.memory_space<vmem>>, vector<128x128xbf16>
    %cst_14 = arith.constant dense<0.000000e+00> : vector<16x128xf32>
    %18 = tpu.matmul %16, %17, %cst_14 {dimension_numbers = #tpu.dot_dimension_numbers<[1], [0], [0], [1], [0, 0, 1, 1], [], []>} : vector<16x128xbf16>, vector<128x128xbf16>, vector<16x128xf32> -> vector<16x128xf32>
    %c0_15 = arith.constant 0 : index
    %c0_16 = arith.constant 0 : index
    %19 = vector.load %arg7[%c0_15, %c0_16] : memref<1x128xf32, #tpu.memory_space<vmem>>, vector<1x128xf32>
    %20 = vector.broadcast %19 : vector<1x128xf32> to vector<16x128xf32>
    %21 = arith.addf %18, %20 : vector<16x128xf32>
    %22 = vector.extract_strided_slice %21 {offsets = [0, 0], sizes = [16, 3], strides = [1, 1]} : vector<16x128xf32> to vector<16x3xf32>
    %c0_17 = arith.constant 0 : index
    %c0_18 = arith.constant 0 : index
    %23 = vector.load %arg8[%c0_17, %c0_18] : memref<16x3xf32, #tpu.memory_space<vmem>>, vector<16x3xf32>
    tpu.vector_store %arg8[%c0_17, %c0_18], %22 {strides = array<i32>} : memref<16x3xf32, #tpu.memory_space<vmem>>, vector<16x3xf32>,
    return
  }
  func.func @transform_0(%arg0: i32) -> (i32, i32) {
    %c0_i32 = arith.constant 0 : i32
    %c0_i32_0 = arith.constant 0 : i32
    return %arg0, %c0_i32 : i32, i32
  }
  func.func @transform_1(%arg0: i32) -> (i32, i32) {
    %c0_i32 = arith.constant 0 : i32
    %c0_i32_0 = arith.constant 0 : i32
    %c0_i32_1 = arith.constant 0 : i32
    return %c0_i32, %c0_i32_0 : i32, i32
  }
  func.func @transform_2(%arg0: i32) -> (i32, i32) {
    %c0_i32 = arith.constant 0 : i32
    %c0_i32_0 = arith.constant 0 : i32
    %c0_i32_1 = arith.constant 0 : i32
    return %c0_i32, %c0_i32_0 : i32, i32
  }
  func.func @transform_3(%arg0: i32) -> (i32, i32) {
    %c0_i32 = arith.constant 0 : i32
    %c0_i32_0 = arith.constant 0 : i32
    %c0_i32_1 = arith.constant 0 : i32
    return %c0_i32, %c0_i32_0 : i32, i32
  }
  func.func @transform_4(%arg0: i32) -> (i32, i32) {
    %c0_i32 = arith.constant 0 : i32
    %c0_i32_0 = arith.constant 0 : i32
    %c0_i32_1 = arith.constant 0 : i32
    return %c0_i32, %c0_i32_0 : i32, i32
  }
  func.func @transform_5(%arg0: i32) -> (i32, i32) {
    %c0_i32 = arith.constant 0 : i32
    %c0_i32_0 = arith.constant 0 : i32
    %c0_i32_1 = arith.constant 0 : i32
    return %c0_i32, %c0_i32_0 : i32, i32
  }
  func.func @transform_6(%arg0: i32) -> (i32, i32) {
    %c0_i32 = arith.constant 0 : i32
    %c0_i32_0 = arith.constant 0 : i32
    %c0_i32_1 = arith.constant 0 : i32
    return %c0_i32, %c0_i32_0 : i32, i32
  }
  func.func @transform_7(%arg0: i32) -> (i32, i32) {
    %c0_i32 = arith.constant 0 : i32
    %c0_i32_0 = arith.constant 0 : i32
    return %arg0, %c0_i32 : i32, i32
  }
}

</mosaic_0001>

<llo_original>
// kernel: tpu_custom_call.1
$region0: #{tpu_custom_call.1}
  #allocation0 [shape = 'u32[]', space=smem, size = 0x4, offset = 0x4, fixed_abs, tag = 'smem constant byte address 0x4 - core index']
  #allocation1 [shape = 'u32[144,128]{1,0:T(1,128)}', space=vmem, size = 0x12000, scoped, tag = 'internal scratch']
  %s0 = inlined_call_operand.hbm [shape: bf16[16,24], index: 0, kind: input, shape index: {}]
  %s1 = inlined_call_operand.hbm [shape: bf16[24,128], index: 1, kind: input, shape index: {}]
  %s2 = inlined_call_operand.vmem [shape: f32[1,128], index: 2, kind: input, shape index: {}]
  %s3 = inlined_call_operand.hbm [shape: bf16[128,128], index: 3, kind: input, shape index: {}]
  %s4 = inlined_call_operand.vmem [shape: f32[1,128], index: 4, kind: input, shape index: {}]
  %s5 = inlined_call_operand.hbm [shape: bf16[128,128], index: 5, kind: input, shape index: {}]
  %s6 = inlined_call_operand.vmem [shape: f32[1,128], index: 6, kind: input, shape index: {}]
  %s7 = inlined_call_operand.vmem [shape: f32[16,3], index: 7, kind: output, shape index: {}]
  %s8 = sld [smem:[#allocation0]]
  $region54: #{tpu_custom_call.1} parent=0
    _
  %s10 = ssub.s32 1, %s8
  %s11 = scalar_select 0, %s10, %s8
  $region1: #{tpu_custom_call.1} parent=0
    #allocation2 [shape = 'u8[4096]{0}', space=vmem, size = 0x1000, scoped, tag = 'input window, operand 0, single buffered']
    #allocation3 [shape = 's32[1]{0}', space=sflag, size = 0x4, scoped, tag = 'scoped memory for tpu_custom_call.1']
    #allocation4 [shape = 'u8[6144]{0}', space=vmem, size = 0x1800, scoped, tag = 'input window, operand 1, single buffered']
    #allocation5 [shape = 's32[1]{0}', space=sflag, size = 0x4, scoped, tag = 'scoped memory for tpu_custom_call.1']
    #allocation6 [shape = 'u8[32768]{0}', space=vmem, size = 0x8000, scoped, tag = 'input window, operand 3, single buffered']
    #allocation7 [shape = 'u8[32768]{0}', space=vmem, size = 0x8000, scoped, tag = 'input window, operand 5, single buffered']
    #allocation8 [shape = 's32[1]{0}', space=sflag, size = 0x4, scoped, tag = 'scoped memory for tpu_custom_call.1']
    %12 = vsyncpa [#allocation3], 0
    %13 = vsyncpa [#allocation5], 0
    %14 = vsyncpa [#allocation8], 0
    // Predicated region
    $region2: #{tpu_custom_call.1} parent=1 // pred_check
      _
    $region3: #{tpu_custom_call.1} parent=1 // pred_check_branch
      %16 = sbr.rel (0) target = $region5
    $region4: #{tpu_custom_call.1} parent=1 // pred_region
      %s18 = ssub.s32 128, 128
      %19 = vsyncadd [#allocation3], %s18
      %s20 = sshll.u32 [#allocation2], 4
      %s21 = int_to_ptr.vmem [resolvable:$true] %s20
      %26 = dma.hbm_to_vmem [thread:$0]  %s0, 128, %s21, [#allocation3], 64, 64, 4
    $region5: #{tpu_custom_call.1} parent=1 // pred_fallthru
      _
    // Predicated region
    $region6: #{tpu_custom_call.1} parent=1 // pred_check
      _
    $region7: #{tpu_custom_call.1} parent=1 // pred_check_branch
      %28 = sbr.rel (0) target = $region9
    $region8: #{tpu_custom_call.1} parent=1 // pred_region
      %s30 = ssub.s32 192, 192
      %31 = vsyncadd [#allocation5], %s30
      %s32 = sshll.u32 [#allocation4], 4
      %s33 = int_to_ptr.vmem [resolvable:$true] %s32
      %38 = dma.hbm_to_vmem [thread:$0]  %s1, 192, %s33, [#allocation5], 64, 64, 4
    $region9: #{tpu_custom_call.1} parent=1 // pred_fallthru
      _
    // Predicated region
    $region10: #{tpu_custom_call.1} parent=1 // pred_check
      _
    $region11: #{tpu_custom_call.1} parent=1 // pred_check_branch
      %40 = sbr.rel (0) target = $region13
    $region12: #{tpu_custom_call.1} parent=1 // pred_region
      _
    $region13: #{tpu_custom_call.1} parent=1 // pred_fallthru
      _
    // Predicated region
    $region14: #{tpu_custom_call.1} parent=1 // pred_check
      _
    $region15: #{tpu_custom_call.1} parent=1 // pred_check_branch
      %42 = sbr.rel (0) target = $region17
    $region16: #{tpu_custom_call.1} parent=1 // pred_region
      %s44 = ssub.s32 1024, 1024
      %45 = vsyncadd [#allocation5], %s44
      %s46 = sshll.u32 [#allocation6], 4
      %s47 = int_to_ptr.vmem [resolvable:$true] %s46
      %52 = dma.hbm_to_vmem [thread:$0]  %s3, 1024, %s47, [#allocation5], 64, 64, 4
    $region17: #{tpu_custom_call.1} parent=1 // pred_fallthru
      _
    // Predicated region
    $region18: #{tpu_custom_call.1} parent=1 // pred_check
      _
    $region19: #{tpu_custom_call.1} parent=1 // pred_check_branch
      %54 = sbr.rel (0) target = $region21
    $region20: #{tpu_custom_call.1} parent=1 // pred_region
      _
    $region21: #{tpu_custom_call.1} parent=1 // pred_fallthru
      _
    // Predicated region
    $region22: #{tpu_custom_call.1} parent=1 // pred_check
      _
    $region23: #{tpu_custom_call.1} parent=1 // pred_check_branch
      %56 = sbr.rel (0) target = $region25
    $region24: #{tpu_custom_call.1} parent=1 // pred_region
      %s58 = ssub.s32 1024, 1024
      %59 = vsyncadd [#allocation8], %s58
      %s60 = sshll.u32 [#allocation7], 4
      %s61 = int_to_ptr.vmem [resolvable:$true] %s60
      %66 = dma.hbm_to_vmem [thread:$0]  %s5, 1024, %s61, [#allocation8], 64, 64, 4
    $region25: #{tpu_custom_call.1} parent=1 // pred_fallthru
      _
    // Predicated region
    $region26: #{tpu_custom_call.1} parent=1 // pred_check
      _
    $region27: #{tpu_custom_call.1} parent=1 // pred_check_branch
      %68 = sbr.rel (0) target = $region29
    $region28: #{tpu_custom_call.1} parent=1 // pred_region
      _
    $region29: #{tpu_custom_call.1} parent=1 // pred_fallthru
      _
    // Predicated region
    $region30: #{tpu_custom_call.1} parent=1 // pred_check
      _
    $region31: #{tpu_custom_call.1} parent=1 // pred_check_branch
      %70 = sbr.rel (0) target = $region33
    $region32: #{tpu_custom_call.1} parent=1 // pred_region
      %71 = dma.done [#allocation3], 128
    $region33: #{tpu_custom_call.1} parent=1 // pred_fallthru
      _
    // Predicated region
    $region34: #{tpu_custom_call.1} parent=1 // pred_check
      _
    $region35: #{tpu_custom_call.1} parent=1 // pred_check_branch
      %73 = sbr.rel (0) target = $region37
    $region36: #{tpu_custom_call.1} parent=1 // pred_region
      %74 = dma.done [#allocation5], 192
    $region37: #{tpu_custom_call.1} parent=1 // pred_fallthru
      _
    // Predicated region
    $region38: #{tpu_custom_call.1} parent=1 // pred_check
      _
    $region39: #{tpu_custom_call.1} parent=1 // pred_check_branch
      %76 = sbr.rel (0) target = $region41
    $region40: #{tpu_custom_call.1} parent=1 // pred_region
      %77 = dma.done [#allocation5], 1024
    $region41: #{tpu_custom_call.1} parent=1 // pred_fallthru
      _
    // Predicated region
    $region42: #{tpu_custom_call.1} parent=1 // pred_check
      _
    $region43: #{tpu_custom_call.1} parent=1 // pred_check_branch
      %79 = sbr.rel (0) target = $region45
    $region44: #{tpu_custom_call.1} parent=1 // pred_region
      %80 = dma.done [#allocation8], 1024
    $region45: #{tpu_custom_call.1} parent=1 // pred_fallthru
      _
    %v82 = vld [vmem:[#allocation2] sm:$0xf]
    %v83 = vld [vmem:[#allocation2 + $0x4] sm:$0xf]
    %v84 = vld [vmem:[#allocation4] sm:$0xf]
    %v85 = vld [vmem:[#allocation4 + $0x4] sm:$0xf]
    %v86 = vld [vmem:[#allocation4 + $0x8] sm:$0xf]
    %v87 = vld [vmem:[%s2] sm:$0x1]
    %v89 = vlaneseq
    %v90 = vshrl.u32 %v89, 7
    %v91 = vsub.s32 0, %v90
    %v92 = vrot.slane %v87, %v91
    %v96 = vunpack.c.l.b16 %v82
    %v97 = vunpack.c.l.b16 %v83
    %v98 = vpack.c.b16 %v97, %v96
    %v102 = vunpack.c.l.b16 %v84
    %v103 = vunpack.c.l.b16 %v85
    %v104 = vunpack.c.l.b16 %v86
    %v105 = vpack.c.b16 %v103, %v102
    %v106 = vpack.c.b16 %v104, %v104
    %vm108 = vcmask 195584
    %v110 = vsel %vm108, %v98, 0
    %vm112 = vcmask 1043456
    %v114 = vsel %vm112, %v106, 0
    %116 = vmatprep.subr.bf16.mxu0 0
    %117 = vmatpush1.bf16.msra.mxu0 %v105
    %118 = vmatprep.subr.bf16.mxu0 0
    %119 = vmatpush1.bf16.msra.mxu0 %v114
    %120 = vmatprep.subr.bf16.mxu0 0
    %121 = vmatpush1.bf16.msra.mxu0 0
    %122 = vmatprep.subr.bf16.mxu0 0
    %123 = vmatpush1.bf16.msra.mxu0 0
    %124 = vmatprep.subr.bf16.mxu0 0
    %125 = vmatpush1.bf16.msra.mxu0 0
    %126 = vmatprep.subr.bf16.mxu0 0
    %127 = vmatpush1.bf16.msra.mxu0 0
    %128 = vmatprep.subr.bf16.mxu0 0
    %129 = vmatpush1.bf16.msra.mxu0 0
    %130 = vmatprep.subr.bf16.mxu0 0
    %131 = vmatpush1.bf16.msra.mxu0 0
    %132 = vmatprep.subr.bf16.mxu0 0
    %133 = vmatpush1.bf16.msra.mxu0 0
    %134 = vmatprep.subr.bf16.mxu0 0
    %135 = vmatpush1.bf16.msra.mxu0 0
    %136 = vmatprep.subr.bf16.mxu0 0
    %137 = vmatpush1.bf16.msra.mxu0 0
    %138 = vmatprep.subr.bf16.mxu0 0
    %139 = vmatpush1.bf16.msra.mxu0 0
    %140 = vmatprep.subr.bf16.mxu0 0
    %141 = vmatpush1.bf16.msra.mxu0 0
    %142 = vmatprep.subr.bf16.mxu0 0
    %143 = vmatpush1.bf16.msra.mxu0 0
    %144 = vmatprep.subr.bf16.mxu0 0
    %145 = vmatpush1.bf16.msra.mxu0 0
    %146 = vmatprep.subr.bf16.mxu0 0
    %147 = vmatpush1.bf16.msra.mxu0 0
    %148 = vmatprep.mubr.bf16.mxu0 0
    %149 = vmatmul.mubr.bf16.gmra.mrb[0].mxu0 %v110
    %v150 = vpop.f32.mrb[0].mxu0
    %v151 = vadd.f32 %v92, %v150
    %v152 = vpop.f32.mrb[0].mxu0
    %v153 = vpop.f32.mrb[0].mxu0
    %v154 = vadd.f32 %v92, %v153
    %v155 = vpop.f32.mrb[0].mxu0
    %156 = vdwg.mxu0
    %v157 = vmax.f32 %v151, 0.0
    %v158 = vmax.f32 %v154, 0.0
    %v159 = vpack.c.bf16 %v158, %v157
    %v160 = vld [vmem:[#allocation6] sm:$0xf]
    %v161 = vld [vmem:[#allocation6 + $0x4] sm:$0xf]
    %v162 = vld [vmem:[#allocation6 + $0x8] sm:$0xf]
    %v163 = vld [vmem:[#allocation6 + $0xc] sm:$0xf]
    %v164 = vld [vmem:[#allocation6 + $0x10] sm:$0xf]
    %v165 = vld [vmem:[#allocation6 + $0x14] sm:$0xf]
    %v166 = vld [vmem:[#allocation6 + $0x18] sm:$0xf]
    %v167 = vld [vmem:[#allocation6 + $0x1c] sm:$0xf]
    %v168 = vld [vmem:[#allocation6 + $0x20] sm:$0xf]
    %v169 = vld [vmem:[#allocation6 + $0x24] sm:$0xf]
    %v170 = vld [vmem:[#allocation6 + $0x28] sm:$0xf]
    %v171 = vld [vmem:[#allocation6 + $0x2c] sm:$0xf]
    %v172 = vld [vmem:[#allocation6 + $0x30] sm:$0xf]
    %v173 = vld [vmem:[#allocation6 + $0x34] sm:$0xf]
    %v174 = vld [vmem:[#allocation6 + $0x38] sm:$0xf]
    %v175 = vld [vmem:[#allocation6 + $0x3c] sm:$0xf]
    %v176 = vld [vmem:[%s4] sm:$0x1]
    %v178 = vlaneseq
    %v179 = vshrl.u32 %v178, 7
    %v180 = vsub.s32 0, %v179
    %v181 = vrot.slane %v176, %v180
    %v199 = vunpack.c.l.b16 %v160
    %v200 = vunpack.c.l.b16 %v161
    %v201 = vunpack.c.l.b16 %v162
    %v202 = vunpack.c.l.b16 %v163
    %v203 = vunpack.c.l.b16 %v164
    %v204 = vunpack.c.l.b16 %v165
    %v205 = vunpack.c.l.b16 %v166
    %v206 = vunpack.c.l.b16 %v167
    %v207 = vunpack.c.l.b16 %v168
    %v208 = vunpack.c.l.b16 %v169
    %v209 = vunpack.c.l.b16 %v170
    %v210 = vunpack.c.l.b16 %v171
    %v211 = vunpack.c.l.b16 %v172
    %v212 = vunpack.c.l.b16 %v173
    %v213 = vunpack.c.l.b16 %v174
    %v214 = vunpack.c.l.b16 %v175
    %v215 = vpack.c.b16 %v200, %v199
    %v216 = vpack.c.b16 %v202, %v201
    %v217 = vpack.c.b16 %v204, %v203
    %v218 = vpack.c.b16 %v206, %v205
    %v219 = vpack.c.b16 %v208, %v207
    %v220 = vpack.c.b16 %v210, %v209
    %v221 = vpack.c.b16 %v212, %v211
    %v222 = vpack.c.b16 %v214, %v213
    %231 = vmatprep.subr.bf16.mxu0 0
    %232 = vmatpush1.bf16.msra.mxu0 %v215
    %233 = vmatprep.subr.bf16.mxu0 0
    %234 = vmatpush1.bf16.msra.mxu0 %v216
    %235 = vmatprep.subr.bf16.mxu0 0
    %236 = vmatpush1.bf16.msra.mxu0 %v217
    %237 = vmatprep.subr.bf16.mxu0 0
    %238 = vmatpush1.bf16.msra.mxu0 %v218
    %239 = vmatprep.subr.bf16.mxu0 0
    %240 = vmatpush1.bf16.msra.mxu0 %v219
    %241 = vmatprep.subr.bf16.mxu0 0
    %242 = vmatpush1.bf16.msra.mxu0 %v220
    %243 = vmatprep.subr.bf16.mxu0 0
    %244 = vmatpush1.bf16.msra.mxu0 %v221
    %245 = vmatprep.subr.bf16.mxu0 0
    %246 = vmatpush1.bf16.msra.mxu0 %v222
    %247 = vmatprep.subr.bf16.mxu0 0
    %248 = vmatpush1.bf16.msra.mxu0 0
    %249 = vmatprep.subr.bf16.mxu0 0
    %250 = vmatpush1.bf16.msra.mxu0 0
    %251 = vmatprep.subr.bf16.mxu0 0
    %252 = vmatpush1.bf16.msra.mxu0 0
    %253 = vmatprep.subr.bf16.mxu0 0
    %254 = vmatpush1.bf16.msra.mxu0 0
    %255 = vmatprep.subr.bf16.mxu0 0
    %256 = vmatpush1.bf16.msra.mxu0 0
    %257 = vmatprep.subr.bf16.mxu0 0
    %258 = vmatpush1.bf16.msra.mxu0 0
    %259 = vmatprep.subr.bf16.mxu0 0
    %260 = vmatpush1.bf16.msra.mxu0 0
    %261 = vmatprep.subr.bf16.mxu0 0
    %262 = vmatpush1.bf16.msra.mxu0 0
    %263 = vmatprep.mubr.bf16.mxu0 0
    %264 = vmatmul.mubr.bf16.gmra.mrb[0].mxu0 %v159
    %v265 = vpop.f32.mrb[0].mxu0
    %v266 = vadd.f32 %v181, %v265
    %v267 = vpop.f32.mrb[0].mxu0
    %v268 = vpop.f32.mrb[0].mxu0
    %v269 = vadd.f32 %v181, %v268
    %v270 = vpop.f32.mrb[0].mxu0
    %271 = vdwg.mxu0
    %v272 = vmax.f32 %v266, 0.0
    %v273 = vmax.f32 %v269, 0.0
    %v274 = vpack.c.bf16 %v273, %v272
    %v275 = vld [vmem:[#allocation7] sm:$0xf]
    %v276 = vld [vmem:[#allocation7 + $0x4] sm:$0xf]
    %v277 = vld [vmem:[#allocation7 + $0x8] sm:$0xf]
    %v278 = vld [vmem:[#allocation7 + $0xc] sm:$0xf]
    %v279 = vld [vmem:[#allocation7 + $0x10] sm:$0xf]
    %v280 = vld [vmem:[#allocation7 + $0x14] sm:$0xf]
    %v281 = vld [vmem:[#allocation7 + $0x18] sm:$0xf]
    %v282 = vld [vmem:[#allocation7 + $0x1c] sm:$0xf]
    %v283 = vld [vmem:[#allocation7 + $0x20] sm:$0xf]
    %v284 = vld [vmem:[#allocation7 + $0x24] sm:$0xf]
    %v285 = vld [vmem:[#allocation7 + $0x28] sm:$0xf]
    %v286 = vld [vmem:[#allocation7 + $0x2c] sm:$0xf]
    %v287 = vld [vmem:[#allocation7 + $0x30] sm:$0xf]
    %v288 = vld [vmem:[#allocation7 + $0x34] sm:$0xf]
    %v289 = vld [vmem:[#allocation7 + $0x38] sm:$0xf]
    %v290 = vld [vmem:[#allocation7 + $0x3c] sm:$0xf]
    %v291 = vld [vmem:[%s6] sm:$0x1]
    %v293 = vlaneseq
    %v294 = vshrl.u32 %v293, 7
    %v295 = vsub.s32 0, %v294
    %v296 = vrot.slane %v291, %v295
    %v314 = vunpack.c.l.b16 %v275
    %v315 = vunpack.c.l.b16 %v276
    %v316 = vunpack.c.l.b16 %v277
    %v317 = vunpack.c.l.b16 %v278
    %v318 = vunpack.c.l.b16 %v279
    %v319 = vunpack.c.l.b16 %v280
    %v320 = vunpack.c.l.b16 %v281
    %v321 = vunpack.c.l.b16 %v282
    %v322 = vunpack.c.l.b16 %v283
    %v323 = vunpack.c.l.b16 %v284
    %v324 = vunpack.c.l.b16 %v285
    %v325 = vunpack.c.l.b16 %v286
    %v326 = vunpack.c.l.b16 %v287
    %v327 = vunpack.c.l.b16 %v288
    %v328 = vunpack.c.l.b16 %v289
    %v329 = vunpack.c.l.b16 %v290
    %v330 = vpack.c.b16 %v315, %v314
    %v331 = vpack.c.b16 %v317, %v316
    %v332 = vpack.c.b16 %v319, %v318
    %v333 = vpack.c.b16 %v321, %v320
    %v334 = vpack.c.b16 %v323, %v322
    %v335 = vpack.c.b16 %v325, %v324
    %v336 = vpack.c.b16 %v327, %v326
    %v337 = vpack.c.b16 %v329, %v328
    %346 = vmatprep.subr.bf16.mxu0 0
    %347 = vmatpush1.bf16.msra.mxu0 %v330
    %348 = vmatprep.subr.bf16.mxu0 0
    %349 = vmatpush1.bf16.msra.mxu0 %v331
    %350 = vmatprep.subr.bf16.mxu0 0
    %351 = vmatpush1.bf16.msra.mxu0 %v332
    %352 = vmatprep.subr.bf16.mxu0 0
    %353 = vmatpush1.bf16.msra.mxu0 %v333
    %354 = vmatprep.subr.bf16.mxu0 0
    %355 = vmatpush1.bf16.msra.mxu0 %v334
    %356 = vmatprep.subr.bf16.mxu0 0
    %357 = vmatpush1.bf16.msra.mxu0 %v335
    %358 = vmatprep.subr.bf16.mxu0 0
    %359 = vmatpush1.bf16.msra.mxu0 %v336
    %360 = vmatprep.subr.bf16.mxu0 0
    %361 = vmatpush1.bf16.msra.mxu0 %v337
    %362 = vmatprep.subr.bf16.mxu0 0
    %363 = vmatpush1.bf16.msra.mxu0 0
    %364 = vmatprep.subr.bf16.mxu0 0
    %365 = vmatpush1.bf16.msra.mxu0 0
    %366 = vmatprep.subr.bf16.mxu0 0
    %367 = vmatpush1.bf16.msra.mxu0 0
    %368 = vmatprep.subr.bf16.mxu0 0
    %369 = vmatpush1.bf16.msra.mxu0 0
    %370 = vmatprep.subr.bf16.mxu0 0
    %371 = vmatpush1.bf16.msra.mxu0 0
    %372 = vmatprep.subr.bf16.mxu0 0
    %373 = vmatpush1.bf16.msra.mxu0 0
    %374 = vmatprep.subr.bf16.mxu0 0
    %375 = vmatpush1.bf16.msra.mxu0 0
    %376 = vmatprep.subr.bf16.mxu0 0
    %377 = vmatpush1.bf16.msra.mxu0 0
    %378 = vmatprep.mubr.bf16.mxu0 0
    %379 = vmatmul.mubr.bf16.gmra.mrb[0].mxu0 %v274
    %v380 = vpop.f32.mrb[0].mxu0
    %v381 = vadd.f32 %v296, %v380
    %v382 = vpop.f32.mrb[0].mxu0
    %v383 = vpop.f32.mrb[0].mxu0
    %v384 = vadd.f32 %v296, %v383
    %v385 = vpop.f32.mrb[0].mxu0
    %386 = vdwg.mxu0
    %vm387 = vcmask 23552
    %388 = vst.msk [vmem:[%s7] sm:$0xff] %vm387, %v381
    %389 = vst.msk [vmem:[%s7 + $0x8] sm:$0xff] %vm387, %v384
    // Predicated region
    $region46: #{tpu_custom_call.1} parent=1 // pred_check
      _
    $region47: #{tpu_custom_call.1} parent=1 // pred_check_branch
      %391 = sbr.rel (0) target = $region49
    $region48: #{tpu_custom_call.1} parent=1 // pred_region
      _
    $region49: #{tpu_custom_call.1} parent=1 // pred_fallthru
      _
    // Predicated region
    $region50: #{tpu_custom_call.1} parent=1 // pred_check
      _
    $region51: #{tpu_custom_call.1} parent=1 // pred_check_branch
      %393 = sbr.rel (0) target = $region53
    $region52: #{tpu_custom_call.1} parent=1 // pred_region
      _
    $region53: #{tpu_custom_call.1} parent=1 // pred_fallthru
      _
    %394 = vsyncpa [#allocation3], 1
    %395 = vsyncpa [#allocation5], 1
    %396 = vsyncpa [#allocation8], 1

</llo_original>
